<compile_context>
chip_gen: v7x
topology: tpu7x:2x2x1
jax: 0.10.0
libtpu: 0.0.40
codegen_flags: <defaults>
</compile_context>

<pallas_src>
import jax
import jax.numpy as jnp
from jax import lax
from jax.experimental import pallas as pl
from jax.experimental.pallas import tpu as pltpu

VISUAL_EMBEDDING = 64   # hard-coded in the PyTorch module


def _pick_tile_m(num_item, feat_dim, emb_dim, out_dim, vf_bytes, emb_bytes,
                 tile_budget_bytes=20 << 20):
    """Largest row tile whose double-buffered VMEM footprint fits the budget.

    ~20 MiB of tile budget stays inside the default scoped-VMEM limits of
    v6e/v7x (32 MiB) with headroom for the resident weight and internal
    scratch; on v5e (16 MiB default) we raise vmem_limit_bytes explicitly.
    Bigger tiles amortize the ~0.35 us per-grid-step overhead (512-1024 rows
    is ~85% of the HBM roofline on v6e vs ~63% at 256).
    With feat_dim=4096: f32 -> ~600 rows, bf16 -> 1024 rows.
    """
    per_row = 2 * (feat_dim * vf_bytes + emb_dim * emb_bytes + out_dim * 4)
    tile = int(tile_budget_bytes // max(per_row, 1))
    tile = max(8, min(1024, (tile // 8) * 8))
    if num_item <= tile:
        return num_item            # single full-extent tile is always legal
    return tile


def vbpr_forward(user_embedding, item_embedding, v_feat, lin_w, lin_b):
    """Reproduces VBPR.forward().

    lin_w is the PyTorch nn.Linear weight in (out=64, in=feat_dim) layout; it
    is NOT transposed on the host — the MXU consumes the transposed operand
    through dot_general dimension_numbers, avoiding a separate XLA transpose.

    To run the dominant v_feat read stream in bf16 (the main roofline lever at
    real sizes), pass v_feat already stored as bfloat16; the matmul always
    accumulates in float32 and the result stays float32.
    """
    num_item, feat_dim = v_feat.shape
    emb_dim = item_embedding.shape[1]
    out_dim = emb_dim + VISUAL_EMBEDDING
    assert user_embedding.shape[1] == out_dim
    assert lin_w.shape == (VISUAL_EMBEDDING, feat_dim)

    # Match the weight dtype to v_feat so the MXU sees a homogeneous operand
    # pair (bf16 x bf16 or f32 x f32); accumulation is always f32.
    w = lin_w.astype(v_feat.dtype)                       # (64, feat_dim), tiny
    b2d = lin_b.reshape(1, VISUAL_EMBEDDING).astype(jnp.float32)

    vf_bytes = v_feat.dtype.itemsize
    emb_bytes = item_embedding.dtype.itemsize
    tile_m = _pick_tile_m(num_item, feat_dim, emb_dim, out_dim,
                          vf_bytes, emb_bytes)
    grid_m = pl.cdiv(num_item, tile_m)

    def item_kernel(item_emb_ref, vfeat_ref, w_ref, b_ref, out_ref):
        # (tile_m, feat_dim) contracted with (64, feat_dim) on the feature
        # axis -> (tile_m, 64); f32 accumulation on the MXU.
        vis = lax.dot_general(
            vfeat_ref[...], w_ref[...],
            dimension_numbers=(((1,), (1,)), ((), ())),
            preferred_element_type=jnp.float32,
        ) + b_ref[...]
        # In-register lane-axis concat followed by a single full-width,
        # unmasked store (out_dim is lane-dense).  The lane shuffle for the
        # upper half rides the XLU slot, which is idle while the MXU / DMA
        # streams dominate, so this is cheaper than two masked vst's.
        out_ref[...] = jnp.concatenate(
            [item_emb_ref[...].astype(jnp.float32), vis], axis=-1
        ).astype(out_ref.dtype)

    # Scoped-VMEM: double-buffered row tiles + resident weight (+ margin).
    tile_bytes = 2 * tile_m * (feat_dim * vf_bytes
                               + emb_dim * emb_bytes
                               + out_dim * 4)
    weight_bytes = 2 * (VISUAL_EMBEDDING * feat_dim * vf_bytes
                        + VISUAL_EMBEDDING * 4)
    vmem_limit = int(max(16 << 20, tile_bytes + weight_bytes + (8 << 20)))

    cost = pl.CostEstimate(
        flops=2 * num_item * feat_dim * VISUAL_EMBEDDING,
        transcendentals=0,
        bytes_accessed=(num_item * feat_dim * vf_bytes
                        + num_item * emb_dim * emb_bytes
                        + VISUAL_EMBEDDING * feat_dim * vf_bytes
                        + VISUAL_EMBEDDING * 4
                        + num_item * out_dim * 4),
    )

    item_block = pl.pallas_call(
        item_kernel,
        out_shape=jax.ShapeDtypeStruct((num_item, out_dim), jnp.float32),
        grid_spec=pltpu.PrefetchScalarGridSpec(
            num_scalar_prefetch=0,
            grid=(grid_m,),
            in_specs=[
                # Row tiles march with the grid (auto double-buffered)...
                pl.BlockSpec((tile_m, emb_dim), lambda i: (i, 0)),
                # v_feat is the dominant HBM stream.  (If xprof on v7x shows
                # exposed DMA, bump this one to pipeline_mode=pl.Buffered(3)
                # and re-check the VMEM budget.)
                pl.BlockSpec((tile_m, feat_dim), lambda i: (i, 0)),
                # ...while the Linear weight + bias stay VMEM-resident
                # (constant index_map -> fetched once, no per-step DMA).
                pl.BlockSpec((VISUAL_EMBEDDING, feat_dim), lambda i: (0, 0)),
                pl.BlockSpec((1, VISUAL_EMBEDDING), lambda i: (0, 0)),
            ],
            out_specs=pl.BlockSpec((tile_m, out_dim), lambda i: (i, 0)),
        ),
        compiler_params=pltpu.CompilerParams(
            # Independent row tiles: shard the grid across both TensorCores on
            # v7x; harmless on single-TC v5e/v6e.
            dimension_semantics=("parallel",),
            vmem_limit_bytes=vmem_limit,
        ),
        cost_estimate=cost,
    )(item_embedding, v_feat, w, b2d)

    # Row-wise concat of the user block on top of the item block.  Writing
    # item tiles straight into the final buffer would require an ANY-space
    # output with manual per-tile DMA at a non-tile-aligned row offset
    # (num_user is arbitrary) plus dynamic-length handling of the ragged last
    # tile; at realistic feat_dim (>=512) this concat is only a few percent of
    # total HBM traffic, so we keep the robust blocked output.
    return jnp.concatenate([user_embedding, item_block], axis=0)


def _xavier_uniform(key, shape):
    # torch.nn.init.xavier_uniform_ on a 2-D (rows, cols) tensor:
    # limit = sqrt(6 / (rows + cols))
    limit = jnp.sqrt(6.0 / (shape[0] + shape[1]))
    return jax.random.uniform(key, shape, jnp.float32, -limit, limit)


if __name__ == "__main__":
    # Small, module-consistent shapes.
    num_user = 8
    num_item = 16
    embedding_dim = 64
    feat_dim = 128

    key = jax.random.PRNGKey(0)
    k_user, k_item, k_feat, k_w, k_b = jax.random.split(key, 5)

    user_embedding = _xavier_uniform(
        k_user, (num_user, embedding_dim + VISUAL_EMBEDDING))
    item_embedding = _xavier_uniform(k_item, (num_item, embedding_dim))
    v_feat = jax.random.normal(k_feat, (num_item, feat_dim), jnp.float32)
    lin_w = _xavier_uniform(k_w, (VISUAL_EMBEDDING, feat_dim))   # (out, in)
    bound = 1.0 / jnp.sqrt(feat_dim)
    lin_b = jax.random.uniform(k_b, (VISUAL_EMBEDDING,), jnp.float32,
                               -bound, bound)

    # --- float32 path (exact module semantics) ---
    result = vbpr_forward(user_embedding, item_embedding, v_feat, lin_w, lin_b)
    result = jax.block_until_ready(result)

    visual_ref = v_feat @ lin_w.T + lin_b
    item_ref = jnp.concatenate([item_embedding, visual_ref], axis=-1)
    ref = jnp.concatenate([user_embedding, item_ref], axis=0)
    assert result.shape == (num_user + num_item,
                            embedding_dim + VISUAL_EMBEDDING)
    assert jnp.allclose(result, ref, atol=1e-3, rtol=1e-3)

    # --- bf16-fed path (halves the dominant v_feat HBM read at real sizes) ---
    v_feat_bf16 = v_feat.astype(jnp.bfloat16)
    result_bf16 = vbpr_forward(user_embedding, item_embedding, v_feat_bf16,
                               lin_w, lin_b)
    result_bf16 = jax.block_until_ready(result_bf16)
    assert result_bf16.shape == result.shape
    assert jnp.allclose(result_bf16, ref, atol=5e-2, rtol=5e-2)

    print("KERNEL_OK")
</pallas_src>

<mosaic_0001>
module attributes {stable_mosaic.version = 11 : i64} {
  func.func @item_kernel(%arg0: i32, %arg1: memref<16x64xf32, #tpu.memory_space<vmem>>, %arg2: memref<16x128xf32, #tpu.memory_space<vmem>>, %arg3: memref<64x128xf32, #tpu.memory_space<vmem>>, %arg4: memref<1x64xf32, #tpu.memory_space<vmem>>, %arg5: memref<16x128xf32, #tpu.memory_space<vmem>>) attributes {dimension_semantics = [#tpu.dimension_semantics<parallel>], iteration_bounds = array<i64: 1>, scalar_prefetch = 0 : i64, scratch_operands = 0 : i64, tpu.core_type = #tpu.core_type<tc>, window_params = [{transform_indices = @transform_0, window_bounds = array<i64: 16, 64>}, {transform_indices = @transform_1, window_bounds = array<i64: 16, 128>}, {pipeline_mode = #tpu.pipeline_mode<synchronous>, transform_indices = @transform_2, window_bounds = array<i64: 64, 128>}, {pipeline_mode = #tpu.pipeline_mode<synchronous>, transform_indices = @transform_3, window_bounds = array<i64: 1, 64>}, {transform_indices = @transform_4, window_bounds = array<i64: 16, 128>}]} {
    %c0 = arith.constant 0 : index
    %c0_0 = arith.constant 0 : index
    %0 = vector.load %arg2[%c0, %c0_0] : memref<16x128xf32, #tpu.memory_space<vmem>>, vector<16x128xf32>
    %c0_1 = arith.constant 0 : index
    %c0_2 = arith.constant 0 : index
    %1 = vector.load %arg3[%c0_1, %c0_2] : memref<64x128xf32, #tpu.memory_space<vmem>>, vector<64x128xf32>
    %cst = arith.constant dense<0.000000e+00> : vector<16x64xf32>
    %2 = tpu.matmul %0, %1, %cst {dimension_numbers = #tpu.dot_dimension_numbers<[1], [1], [0], [0], [0, 0, 1, 0], [], []>} : vector<16x128xf32>, vector<64x128xf32>, vector<16x64xf32> -> vector<16x64xf32>
    %c0_3 = arith.constant 0 : index
    %c0_4 = arith.constant 0 : index
    %3 = vector.load %arg4[%c0_3, %c0_4] : memref<1x64xf32, #tpu.memory_space<vmem>>, vector<1x64xf32>
    %4 = vector.broadcast %3 : vector<1x64xf32> to vector<16x64xf32>
    %5 = arith.addf %2, %4 : vector<16x64xf32>
    %c0_5 = arith.constant 0 : index
    %c0_6 = arith.constant 0 : index
    %6 = vector.load %arg1[%c0_5, %c0_6] : memref<16x64xf32, #tpu.memory_space<vmem>>, vector<16x64xf32>
    %7 = tpu.concatenate %6, %5 in 1 : vector<16x64xf32>, vector<16x64xf32> -> vector<16x128xf32>
    %c0_7 = arith.constant 0 : index
    %c0_8 = arith.constant 0 : index
    %8 = vector.load %arg5[%c0_7, %c0_8] : memref<16x128xf32, #tpu.memory_space<vmem>>, vector<16x128xf32>
    tpu.vector_store %arg5[%c0_7, %c0_8], %7 {strides = array<i32>} : memref<16x128xf32, #tpu.memory_space<vmem>>, vector<16x128xf32>,
    return
  }
  func.func @transform_0(%arg0: i32) -> (i32, i32) {
    %c0_i32 = arith.constant 0 : i32
    %c0_i32_0 = arith.constant 0 : i32
    return %arg0, %c0_i32 : i32, i32
  }
  func.func @transform_1(%arg0: i32) -> (i32, i32) {
    %c0_i32 = arith.constant 0 : i32
    %c0_i32_0 = arith.constant 0 : i32
    return %arg0, %c0_i32 : i32, i32
  }
  func.func @transform_2(%arg0: i32) -> (i32, i32) {
    %c0_i32 = arith.constant 0 : i32
    %c0_i32_0 = arith.constant 0 : i32
    %c0_i32_1 = arith.constant 0 : i32
    return %c0_i32, %c0_i32_0 : i32, i32
  }
  func.func @transform_3(%arg0: i32) -> (i32, i32) {
    %c0_i32 = arith.constant 0 : i32
    %c0_i32_0 = arith.constant 0 : i32
    %c0_i32_1 = arith.constant 0 : i32
    return %c0_i32, %c0_i32_0 : i32, i32
  }
  func.func @transform_4(%arg0: i32) -> (i32, i32) {
    %c0_i32 = arith.constant 0 : i32
    %c0_i32_0 = arith.constant 0 : i32
    return %arg0, %c0_i32 : i32, i32
  }
}

</mosaic_0001>

<llo_original>
// kernel: tpu_custom_call.1
$region0: #{tpu_custom_call.1}
  #allocation0 [shape = 'u32[]', space=smem, size = 0x4, offset = 0x4, fixed_abs, tag = 'smem constant byte address 0x4 - core index']
  #allocation1 [shape = 'u32[144,128]{1,0:T(1,128)}', space=vmem, size = 0x12000, scoped, tag = 'internal scratch']
  %s0 = inlined_call_operand.hbm [shape: f32[16,64], index: 0, kind: input, shape index: {}]
  %s1 = inlined_call_operand.hbm [shape: f32[16,128], index: 1, kind: input, shape index: {}]
  %s2 = inlined_call_operand.hbm [shape: f32[64,128], index: 2, kind: input, shape index: {}]
  %s3 = inlined_call_operand.vmem [shape: f32[1,64], index: 3, kind: input, shape index: {}]
  %s4 = inlined_call_operand.hbm [shape: f32[16,128], index: 4, kind: output, shape index: {}]
  %s5 = sld [smem:[#allocation0]]
  $region38: #{tpu_custom_call.1} parent=0
    _
  %s7 = ssub.s32 1, %s5
  %s8 = scalar_select 0, %s7, %s5
  $region1: #{tpu_custom_call.1} parent=0
    #allocation2 [shape = 'u8[8192]{0}', space=vmem, size = 0x2000, scoped, tag = 'input window, operand 0, single buffered']
    #allocation3 [shape = 's32[1]{0}', space=sflag, size = 0x4, scoped, tag = 'scoped memory for tpu_custom_call.1']
    #allocation4 [shape = 's32[1]{0}', space=sflag, size = 0x4, scoped, tag = 'scoped memory for tpu_custom_call.1']
    #allocation5 [shape = 'u8[8192]{0}', space=vmem, size = 0x2000, scoped, tag = 'input window, operand 1, single buffered']
    #allocation6 [shape = 's32[1]{0}', space=sflag, size = 0x4, scoped, tag = 'scoped memory for tpu_custom_call.1']
    #allocation7 [shape = 'u8[32768]{0}', space=vmem, size = 0x8000, scoped, tag = 'input window, operand 2, single buffered']
    #allocation8 [shape = 'u8[8192]{0}', space=vmem, size = 0x2000, scoped, tag = 'output window, operand 0, single buffered']
    %9 = vsyncpa [#allocation3], 0
    %10 = vsyncpa [#allocation6], 0
    %11 = vsyncpa [#allocation4], 0
    // Predicated region
    $region2: #{tpu_custom_call.1} parent=1 // pred_check
      _
    $region3: #{tpu_custom_call.1} parent=1 // pred_check_branch
      %13 = sbr.rel (0) target = $region5
    $region4: #{tpu_custom_call.1} parent=1 // pred_region
      %s15 = ssub.s32 256, 256
      %16 = vsyncadd [#allocation3], %s15
      %s17 = sshll.u32 [#allocation2], 4
      %s18 = int_to_ptr.vmem [resolvable:$true] %s17
      %23 = dma.hbm_to_vmem [thread:$0]  %s0, 256, %s18, [#allocation3], 128, 128, 8
    $region5: #{tpu_custom_call.1} parent=1 // pred_fallthru
      _
    // Predicated region
    $region6: #{tpu_custom_call.1} parent=1 // pred_check
      _
    $region7: #{tpu_custom_call.1} parent=1 // pred_check_branch
      %25 = sbr.rel (0) target = $region9
    $region8: #{tpu_custom_call.1} parent=1 // pred_region
      %s27 = ssub.s32 256, 256
      %28 = vsyncadd [#allocation6], %s27
      %s29 = sshll.u32 [#allocation5], 4
      %s30 = int_to_ptr.vmem [resolvable:$true] %s29
      %35 = dma.hbm_to_vmem [thread:$0]  %s1, 256, %s30, [#allocation6], 128, 128, 8
    $region9: #{tpu_custom_call.1} parent=1 // pred_fallthru
      _
    // Predicated region
    $region10: #{tpu_custom_call.1} parent=1 // pred_check
      _
    $region11: #{tpu_custom_call.1} parent=1 // pred_check_branch
      %37 = sbr.rel (0) target = $region13
    $region12: #{tpu_custom_call.1} parent=1 // pred_region
      %s39 = ssub.s32 1024, 1024
      %40 = vsyncadd [#allocation6], %s39
      %s41 = sshll.u32 [#allocation7], 4
      %s42 = int_to_ptr.vmem [resolvable:$true] %s41
      %47 = dma.hbm_to_vmem [thread:$0]  %s2, 1024, %s42, [#allocation6], 128, 128, 8
    $region13: #{tpu_custom_call.1} parent=1 // pred_fallthru
      _
    // Predicated region
    $region14: #{tpu_custom_call.1} parent=1 // pred_check
      _
    $region15: #{tpu_custom_call.1} parent=1 // pred_check_branch
      %49 = sbr.rel (0) target = $region17
    $region16: #{tpu_custom_call.1} parent=1 // pred_region
      _
    $region17: #{tpu_custom_call.1} parent=1 // pred_fallthru
      _
    // Predicated region
    $region18: #{tpu_custom_call.1} parent=1 // pred_check
      _
    $region19: #{tpu_custom_call.1} parent=1 // pred_check_branch
      %51 = sbr.rel (0) target = $region21
    $region20: #{tpu_custom_call.1} parent=1 // pred_region
      %52 = dma.done [#allocation3], 256
    $region21: #{tpu_custom_call.1} parent=1 // pred_fallthru
      _
    // Predicated region
    $region22: #{tpu_custom_call.1} parent=1 // pred_check
      _
    $region23: #{tpu_custom_call.1} parent=1 // pred_check_branch
      %54 = sbr.rel (0) target = $region25
    $region24: #{tpu_custom_call.1} parent=1 // pred_region
      %55 = dma.done [#allocation6], 256
    $region25: #{tpu_custom_call.1} parent=1 // pred_fallthru
      _
    // Predicated region
    $region26: #{tpu_custom_call.1} parent=1 // pred_check
      _
    $region27: #{tpu_custom_call.1} parent=1 // pred_check_branch
      %57 = sbr.rel (0) target = $region29
    $region28: #{tpu_custom_call.1} parent=1 // pred_region
      %58 = dma.done [#allocation6], 1024
    $region29: #{tpu_custom_call.1} parent=1 // pred_fallthru
      _
    %v59 = vld [vmem:[#allocation5] sm:$0xff]
    %v60 = vld [vmem:[#allocation5 + $0x8] sm:$0xff]
    %v61 = vld [vmem:[#allocation7] sm:$0xff]
    %v62 = vld [vmem:[#allocation7 + $0x8] sm:$0xff]
    %v63 = vld [vmem:[#allocation7 + $0x10] sm:$0xff]
    %v64 = vld [vmem:[#allocation7 + $0x18] sm:$0xff]
    %v65 = vld [vmem:[#allocation7 + $0x20] sm:$0xff]
    %v66 = vld [vmem:[#allocation7 + $0x28] sm:$0xff]
    %v67 = vld [vmem:[#allocation7 + $0x30] sm:$0xff]
    %v68 = vld [vmem:[#allocation7 + $0x38] sm:$0xff]
    %v69 = vld [vmem:[%s3] sm:$0x1]
    %v71 = vlaneseq
    %v72 = vshrl.u32 %v71, 7
    %v73 = vsub.s32 0, %v72
    %v74 = vrot.slane %v69, %v73
    %76 = vmatprep.subr.mxu0 0.0
    %77 = vmatpush1.xpose.msra.mxu0 %v61
    %78 = vmatprep.subr.mxu0 0.0
    %79 = vmatpush1.xpose.msra.mxu0 %v62
    %80 = vmatprep.subr.mxu0 0.0
    %81 = vmatpush1.xpose.msra.mxu0 %v63
    %82 = vmatprep.subr.mxu0 0.0
    %83 = vmatpush1.xpose.msra.mxu0 %v64
    %84 = vmatprep.subr.mxu0 0.0
    %85 = vmatpush1.xpose.msra.mxu0 %v65
    %86 = vmatprep.subr.mxu0 0.0
    %87 = vmatpush1.xpose.msra.mxu0 %v66
    %88 = vmatprep.subr.mxu0 0.0
    %89 = vmatpush1.xpose.msra.mxu0 %v67
    %90 = vmatprep.subr.mxu0 0.0
    %91 = vmatpush1.xpose.msra.mxu0 %v68
    %92 = vmatprep.subr.mxu0 0.0
    %93 = vmatpush1.xpose.msra.mxu0 0.0
    %94 = vmatprep.subr.mxu0 0.0
    %95 = vmatpush1.xpose.msra.mxu0 0.0
    %96 = vmatprep.subr.mxu0 0.0
    %97 = vmatpush1.xpose.msra.mxu0 0.0
    %98 = vmatprep.subr.mxu0 0.0
    %99 = vmatpush1.xpose.msra.mxu0 0.0
    %100 = vmatprep.subr.mxu0 0.0
    %101 = vmatpush1.xpose.msra.mxu0 0.0
    %102 = vmatprep.subr.mxu0 0.0
    %103 = vmatpush1.xpose.msra.mxu0 0.0
    %104 = vmatprep.subr.mxu0 0.0
    %105 = vmatpush1.xpose.msra.mxu0 0.0
    %106 = vmatprep.subr.mxu0 0.0
    %107 = vmatpush1.xpose.msra.mxu0 0.0
    %108 = vmatprep.subr.mxu0 0.0
    %109 = vmatpush1.xpose.msra.mxu0 0.0
    %110 = vmatprep.subr.mxu0 0.0
    %111 = vmatpush1.xpose.msra.mxu0 0.0
    %112 = vmatprep.subr.mxu0 0.0
    %113 = vmatpush1.xpose.msra.mxu0 0.0
    %114 = vmatprep.subr.mxu0 0.0
    %115 = vmatpush1.xpose.msra.mxu0 0.0
    %116 = vmatprep.subr.mxu0 0.0
    %117 = vmatpush1.xpose.msra.mxu0 0.0
    %118 = vmatprep.subr.mxu0 0.0
    %119 = vmatpush1.xpose.msra.mxu0 0.0
    %120 = vmatprep.subr.mxu0 0.0
    %121 = vmatpush1.xpose.msra.mxu0 0.0
    %122 = vmatprep.subr.mxu0 0.0
    %123 = vmatpush1.xpose.msra.mxu0 0.0
    %124 = vmatprep.subr.mxu0 0.0
    %125 = vmatpush1.xpose.msra.mxu0 0.0
    %126 = vmatprep.subr.mxu0 0.0
    %127 = vmatpush1.xpose.msra.mxu0 0.0
    %128 = vmatprep.subr.mxu0 0.0
    %129 = vmatpush1.xpose.msra.mxu0 0.0
    %130 = vmatprep.subr.mxu0 0.0
    %131 = vmatpush1.xpose.msra.mxu0 0.0
    %132 = vmatprep.subr.mxu0 0.0
    %133 = vmatpush1.xpose.msra.mxu0 0.0
    %134 = vmatprep.subr.mxu0 0.0
    %135 = vmatpush1.xpose.msra.mxu0 0.0
    %136 = vmatprep.subr.mxu0 0.0
    %137 = vmatpush1.xpose.msra.mxu0 0.0
    %138 = vmatprep.subr.mxu0 0.0
    %139 = vmatpush1.xpose.msra.mxu0 0.0
    %140 = vmatprep.mubr.f32.mxu0 0.0
    %141 = vmatmul.mubr.f32.gmra.mrb[0].mxu0 %v59
    %v142 = vpop.f32.mrb[0].mxu0
    %v143 = vadd.f32 %v74, %v142
    %v144 = vpop.f32.mrb[0].mxu0
    %145 = vmatprep.mubr.f32.mxu0 0.0
    %146 = vmatmul.mubr.f32.gmra.mrb[0].mxu0 %v60
    %v147 = vpop.f32.mrb[0].mxu0
    %v148 = vadd.f32 %v74, %v147
    %v149 = vpop.f32.mrb[0].mxu0
    %150 = vdwg.mxu0
    %v151 = vld [vmem:[#allocation2] sm:$0xff]
    %v152 = vld [vmem:[#allocation2 + $0x8] sm:$0xff]
    %155 = vrot.lane.b32.xlu0 %v143, 64
    %v156 = vpop.permute.xlu0 %155
    %157 = vrot.lane.b32.xlu0 %v148, 64
    %v158 = vpop.permute.xlu0 %157
    %vm161 = vcmask 523264
    %v162 = vsel %vm161, %v151, %v156
    %v163 = vsel %vm161, %v152, %v158
    %164 = vst [vmem:[#allocation8] sm:$0xff] %v162
    %165 = vst [vmem:[#allocation8 + $0x8] sm:$0xff] %v163
    // Predicated region
    $region30: #{tpu_custom_call.1} parent=1 // pred_check
      _
    $region31: #{tpu_custom_call.1} parent=1 // pred_check_branch
      %167 = sbr.rel (0) target = $region33
    $region32: #{tpu_custom_call.1} parent=1 // pred_region
      %s169 = ssub.s32 256, 256
      %170 = vsyncadd [#allocation4], %s169
      %s171 = sshll.u32 [#allocation8], 4
      %s172 = int_to_ptr.vmem [resolvable:$true] %s171
      %177 = dma.vmem_to_hbm [thread:$0]  %s172, 256, %s4, [#allocation4], 128, 128, 8
    $region33: #{tpu_custom_call.1} parent=1 // pred_fallthru
      _
    // Predicated region
    $region34: #{tpu_custom_call.1} parent=1 // pred_check
      _
    $region35: #{tpu_custom_call.1} parent=1 // pred_check_branch
      %179 = sbr.rel (0) target = $region37
    $region36: #{tpu_custom_call.1} parent=1 // pred_region
      %180 = dma.done [#allocation4], 256
    $region37: #{tpu_custom_call.1} parent=1 // pred_fallthru
      _
    %181 = vsyncpa [#allocation3], 1
    %182 = vsyncpa [#allocation6], 1
    %183 = vsyncpa [#allocation4], 1

</llo_original>
